<compile_context>
chip_gen: v7x
topology: tpu7x:2x2x1
jax: 0.10.0
libtpu: 0.0.40
codegen_flags: <defaults>
</compile_context>

<pallas_src>
import functools

import jax
import jax.numpy as jnp
from jax.experimental import pallas as pl
from jax.experimental.pallas import tpu as pltpu


def _round_up(x, m):
    return (x + m - 1) // m * m


# ----------------------------------------------------------------------------- in-kernel helpers
def _conv3x3_lane_dense(x, w, b, W):
    """Valid 3x3 conv on a channels-on-sublanes / flat-spatial-on-lanes block.

    x: (Cin, P) float32, P = H*W.     w: (Cout, 9*Cin), columns (dy*3+dx)*Cin + ci.
    b: (Cout, 1) float32.             returns (Cout, P) float32 ("wide" output).
    """
    cin, P = x.shape
    pad = _round_up(2 * W + 2, 128)
    # aligned zero tail so the shifted taps can read past the image end in-kernel
    # (replaces the per-stage host-side jnp.pad of the old version).
    xp = jnp.concatenate([x, jnp.zeros((cin, pad), x.dtype)], axis=1)
    # Build the (9*Cin, P) patch matrix from 9 lane-shifted slices and contract it
    # in ONE MXU matmul (K = 9*Cin) instead of 9 tiny K=Cin dots + VPU adds.
    taps = [xp[:, dy * W + dx: dy * W + dx + P] for dy in range(3) for dx in range(3)]
    patch = jnp.concatenate(taps, axis=0)                         # (9*Cin, P)
    y = jnp.dot(w, patch.astype(w.dtype), preferred_element_type=jnp.float32)
    return y + b


# ----------------------------------------------------------------------------- fused kernels
def decoder_block_kernel(x_ref, w1_ref, b1_ref, w2_ref, b2_ref, wt_ref, bt_ref,
                         o_ref, *, W):
    # x_ref : (Cin,  P)          w1_ref: (Cmid, 9*Cin)    b1_ref: (Cmid, 1)
    # w2_ref: (Cmid, 9*Cmid)     b2_ref: (Cmid, 1)
    # wt_ref: (4*Cout, Cmid)     bt_ref: (4*Cout, 1)
    # o_ref : (4*Cout, P)        rows ordered (dy*2+dx)*Cout + co   (lane-dense)
    x = x_ref[...].astype(jnp.float32)
    a1 = jnp.maximum(_conv3x3_lane_dense(x, w1_ref[...], b1_ref[...], W), 0.0)
    a2 = jnp.maximum(_conv3x3_lane_dense(a1, w2_ref[...], b2_ref[...], W), 0.0)
    # ConvTranspose2d(k=2, s=2): all 4 sub-pixel taps fused into ONE matmul and ONE
    # full-width store (no partial-column masked stores).
    wt = wt_ref[...]
    y = jnp.dot(wt, a2.astype(wt.dtype), preferred_element_type=jnp.float32) + bt_ref[...]
    o_ref[...] = y.astype(o_ref.dtype)


def double_conv_kernel(x_ref, w1_ref, b1_ref, w2_ref, b2_ref, o_ref, *, W):
    # transpose=False variant: just the two conv+ReLU stages.
    x = x_ref[...].astype(jnp.float32)
    a1 = jnp.maximum(_conv3x3_lane_dense(x, w1_ref[...], b1_ref[...], W), 0.0)
    a2 = jnp.maximum(_conv3x3_lane_dense(a1, w2_ref[...], b2_ref[...], W), 0.0)
    o_ref[...] = a2.astype(o_ref.dtype)


# ----------------------------------------------------------------------------- wrapper
def basic_decoder_block_forward(x_nchw, params, transpose=True,
                                compute_dtype=jnp.float32):
    """Pallas forward of BasicDecoderBlock (stride=1, padding=0). NCHW in / NCHW out.

    params use PyTorch layouts:
      w1, w2: (Cout, Cin, 3, 3)   b1, b2: (Cout,)
      wt    : (Cin, Cout, 2, 2)   bt    : (Cout,)     (nn.ConvTranspose2d convention)
    compute_dtype=jnp.bfloat16 enables the bf16-MXU / f32-accumulate path (v6e/v7x).
    """
    N, in_c, H, W = x_nchw.shape
    P = H * W
    mid = params["w1"].shape[0]
    Ho, Wo = H - 4, W - 4                      # spatial size after the two valid 3x3 convs

    # tiny one-off parameter re-layout (PyTorch conventions -> matmul form)
    w1m = params["w1"].transpose(0, 2, 3, 1).reshape(mid, 9 * in_c).astype(compute_dtype)
    w2m = params["w2"].transpose(0, 2, 3, 1).reshape(mid, 9 * mid).astype(compute_dtype)
    b1m = params["b1"].reshape(mid, 1).astype(jnp.float32)
    b2m = params["b2"].reshape(mid, 1).astype(jnp.float32)

    # NCHW -> (N, C, H*W): free reshape; channels on sublanes, spatial on lanes.
    xf = x_nchw.reshape(N, in_c, P).astype(compute_dtype)

    cparams = pltpu.CompilerParams(dimension_semantics=("parallel",))
    conv_specs = [
        pl.BlockSpec((None, in_c, P), lambda n: (n, 0, 0)),
        pl.BlockSpec((mid, 9 * in_c), lambda n: (0, 0)),
        pl.BlockSpec((mid, 1), lambda n: (0, 0)),
        pl.BlockSpec((mid, 9 * mid), lambda n: (0, 0)),
        pl.BlockSpec((mid, 1), lambda n: (0, 0)),
    ]

    if not transpose:
        y = pl.pallas_call(
            functools.partial(double_conv_kernel, W=W),
            out_shape=jax.ShapeDtypeStruct((N, mid, P), jnp.float32),
            grid=(N,),
            in_specs=conv_specs,
            out_specs=pl.BlockSpec((None, mid, P), lambda n: (n, 0, 0)),
            compiler_params=cparams,
        )(xf, w1m, b1m, w2m, b2m)
        return y.reshape(N, mid, H, W)[:, :, :Ho, :Wo]

    cout = params["wt"].shape[1]
    wtm = params["wt"].transpose(2, 3, 1, 0).reshape(4 * cout, mid).astype(compute_dtype)
    btm = jnp.tile(params["bt"].reshape(1, cout), (4, 1)).reshape(4 * cout, 1).astype(jnp.float32)

    y4 = pl.pallas_call(
        functools.partial(decoder_block_kernel, W=W),
        out_shape=jax.ShapeDtypeStruct((N, 4 * cout, P), jnp.float32),
        grid=(N,),
        in_specs=conv_specs + [
            pl.BlockSpec((4 * cout, mid), lambda n: (0, 0)),
            pl.BlockSpec((4 * cout, 1), lambda n: (0, 0)),
        ],
        out_specs=pl.BlockSpec((None, 4 * cout, P), lambda n: (n, 0, 0)),
        compiler_params=cparams,
    )(xf, w1m, b1m, w2m, b2m, wtm, btm)

    # single bit of host glue, once, on the tiny final tensor:
    # trim wide-layout garbage columns + stride-2 sub-pixel interleave.
    y = y4.reshape(N, 2, 2, cout, H, W)[:, :, :, :, :Ho, :Wo]
    return y.transpose(0, 3, 4, 1, 5, 2).reshape(N, cout, 2 * Ho, 2 * Wo)


# ----------------------------------------------------------------------------- pure-JAX reference
def ref_forward(x_nchw, params, transpose=True):
    def conv(x, w, b):
        y = jax.lax.conv_general_dilated(
            x, w, window_strides=(1, 1), padding="VALID",
            dimension_numbers=("NCHW", "OIHW", "NCHW"))
        return jnp.maximum(y + b.reshape(1, -1, 1, 1), 0.0)

    x = conv(x_nchw, params["w1"], params["b1"])
    x = conv(x, params["w2"], params["b2"])
    if transpose:
        wt, bt = params["wt"], params["bt"]
        N, _, Hh, Ww = x.shape
        co = wt.shape[1]
        y = jnp.einsum("nchw,cduv->ndhuwv", x, wt)        # scatter each pixel into a 2x2 block
        x = y.reshape(N, co, 2 * Hh, 2 * Ww) + bt.reshape(1, -1, 1, 1)
    return x


# ----------------------------------------------------------------------------- main
if __name__ == "__main__":
    N, in_c, c, n_mult = 2, 4, 4, 2            # BasicDecoderBlock(in_c=4, c=4, n=2)
    mid = c * n_mult                           # intermediate channels = 8
    H = W = 16

    key = jax.random.PRNGKey(0)
    ks = jax.random.split(key, 7)
    params = {
        "w1": jax.random.normal(ks[0], (mid, in_c, 3, 3), jnp.float32) * 0.2,   # PyTorch Conv2d layout
        "b1": jax.random.normal(ks[1], (mid,), jnp.float32) * 0.1,
        "w2": jax.random.normal(ks[2], (mid, mid, 3, 3), jnp.float32) * 0.2,
        "b2": jax.random.normal(ks[3], (mid,), jnp.float32) * 0.1,
        "wt": jax.random.normal(ks[4], (mid, c, 2, 2), jnp.float32) * 0.2,      # PyTorch ConvTranspose2d layout
        "bt": jax.random.normal(ks[5], (c,), jnp.float32) * 0.1,
    }
    x = jax.random.normal(ks[6], (N, in_c, H, W), jnp.float32)                  # NCHW like PyTorch

    # f32 path (strict check)
    fwd = jax.jit(lambda xx: basic_decoder_block_forward(xx, params, transpose=True))
    out = jax.block_until_ready(fwd(x))
    ref = ref_forward(x, params, transpose=True)
    assert out.shape == (N, c, 2 * (H - 4), 2 * (W - 4)), out.shape             # (2, 4, 24, 24)
    err = float(jnp.max(jnp.abs(out - ref)))
    assert jnp.allclose(out, ref, atol=1e-3, rtol=1e-3), err

    # bf16 compute path (v6e/v7x feedback): bf16 MXU inputs, f32 accumulation.
    fwd_bf16 = jax.jit(lambda xx: basic_decoder_block_forward(
        xx, params, transpose=True, compute_dtype=jnp.bfloat16))
    out_bf16 = jax.block_until_ready(fwd_bf16(x))
    assert out_bf16.shape == out.shape
    err_bf16 = float(jnp.max(jnp.abs(out_bf16 - ref)))
    assert err_bf16 < 0.35, err_bf16

    # transpose=False path (block only, no ConvTranspose2d)
    fwd_nt = jax.jit(lambda xx: basic_decoder_block_forward(xx, params, transpose=False))
    out_nt = jax.block_until_ready(fwd_nt(x))
    ref_nt = ref_forward(x, params, transpose=False)
    assert out_nt.shape == (N, mid, H - 4, W - 4), out_nt.shape                 # (2, 8, 12, 12)
    assert jnp.allclose(out_nt, ref_nt, atol=1e-3, rtol=1e-3), \
        float(jnp.max(jnp.abs(out_nt - ref_nt)))

    print("KERNEL_OK")
</pallas_src>

<mosaic_0001>
module attributes {stable_mosaic.version = 11 : i64} {
  func.func @decoder_block_kernel(%arg0: i32, %arg1: memref<1x4x256xf32, #tpu.memory_space<vmem>>, %arg2: memref<8x36xf32, #tpu.memory_space<vmem>>, %arg3: memref<8x1xf32, #tpu.memory_space<vmem>>, %arg4: memref<8x72xf32, #tpu.memory_space<vmem>>, %arg5: memref<8x1xf32, #tpu.memory_space<vmem>>, %arg6: memref<16x8xf32, #tpu.memory_space<vmem>>, %arg7: memref<16x1xf32, #tpu.memory_space<vmem>>, %arg8: memref<1x16x256xf32, #tpu.memory_space<vmem>>) attributes {dimension_semantics = [#tpu.dimension_semantics<parallel>], iteration_bounds = array<i64: 2>, scalar_prefetch = 0 : i64, scratch_operands = 0 : i64, tpu.core_type = #tpu.core_type<tc>, window_params = [{transform_indices = @transform_0, window_bounds = array<i64: 1, 4, 256>}, {pipeline_mode = #tpu.pipeline_mode<synchronous>, transform_indices = @transform_1, window_bounds = array<i64: 8, 36>}, {pipeline_mode = #tpu.pipeline_mode<synchronous>, transform_indices = @transform_2, window_bounds = array<i64: 8, 1>}, {pipeline_mode = #tpu.pipeline_mode<synchronous>, transform_indices = @transform_3, window_bounds = array<i64: 8, 72>}, {pipeline_mode = #tpu.pipeline_mode<synchronous>, transform_indices = @transform_4, window_bounds = array<i64: 8, 1>}, {pipeline_mode = #tpu.pipeline_mode<synchronous>, transform_indices = @transform_5, window_bounds = array<i64: 16, 8>}, {pipeline_mode = #tpu.pipeline_mode<synchronous>, transform_indices = @transform_6, window_bounds = array<i64: 16, 1>}, {transform_indices = @transform_7, window_bounds = array<i64: 1, 16, 256>}]} {
    %c0 = arith.constant 0 : index
    %c0_0 = arith.constant 0 : index
    %c0_1 = arith.constant 0 : index
    %0 = vector.load %arg1[%c0, %c0_0, %c0_1] : memref<1x4x256xf32, #tpu.memory_space<vmem>>, vector<1x4x256xf32>
    %1 = vector.shape_cast %0 : vector<1x4x256xf32> to vector<4x256xf32>
    %c0_2 = arith.constant 0 : index
    %c0_3 = arith.constant 0 : index
    %2 = vector.load %arg2[%c0_2, %c0_3] : memref<8x36xf32, #tpu.memory_space<vmem>>, vector<8x36xf32>
    %c0_4 = arith.constant 0 : index
    %c0_5 = arith.constant 0 : index
    %3 = vector.load %arg3[%c0_4, %c0_5] : memref<8x1xf32, #tpu.memory_space<vmem>>, vector<8x1xf32>
    %cst = arith.constant 0.000000e+00 : f32
    %4 = vector.broadcast %cst : f32 to vector<4x128xf32>
    %5 = tpu.concatenate %1, %4 in 1 : vector<4x256xf32>, vector<4x128xf32> -> vector<4x384xf32>
    %6 = vector.extract_strided_slice %5 {offsets = [0, 0], sizes = [4, 256], strides = [1, 1]} : vector<4x384xf32> to vector<4x256xf32>
    %7 = vector.extract_strided_slice %5 {offsets = [0, 1], sizes = [4, 256], strides = [1, 1]} : vector<4x384xf32> to vector<4x256xf32>
    %8 = vector.extract_strided_slice %5 {offsets = [0, 2], sizes = [4, 256], strides = [1, 1]} : vector<4x384xf32> to vector<4x256xf32>
    %9 = vector.extract_strided_slice %5 {offsets = [0, 16], sizes = [4, 256], strides = [1, 1]} : vector<4x384xf32> to vector<4x256xf32>
    %10 = vector.extract_strided_slice %5 {offsets = [0, 17], sizes = [4, 256], strides = [1, 1]} : vector<4x384xf32> to vector<4x256xf32>
    %11 = vector.extract_strided_slice %5 {offsets = [0, 18], sizes = [4, 256], strides = [1, 1]} : vector<4x384xf32> to vector<4x256xf32>
    %12 = vector.extract_strided_slice %5 {offsets = [0, 32], sizes = [4, 256], strides = [1, 1]} : vector<4x384xf32> to vector<4x256xf32>
    %13 = vector.extract_strided_slice %5 {offsets = [0, 33], sizes = [4, 256], strides = [1, 1]} : vector<4x384xf32> to vector<4x256xf32>
    %14 = vector.extract_strided_slice %5 {offsets = [0, 34], sizes = [4, 256], strides = [1, 1]} : vector<4x384xf32> to vector<4x256xf32>
    %15 = tpu.concatenate %6, %7, %8, %9, %10, %11, %12, %13, %14 in 0 : vector<4x256xf32>, vector<4x256xf32>, vector<4x256xf32>, vector<4x256xf32>, vector<4x256xf32>, vector<4x256xf32>, vector<4x256xf32>, vector<4x256xf32>, vector<4x256xf32> -> vector<36x256xf32>
    %cst_6 = arith.constant dense<0.000000e+00> : vector<8x256xf32>
    %16 = tpu.matmul %2, %15, %cst_6 {dimension_numbers = #tpu.dot_dimension_numbers<[1], [0], [0], [1], [0, 0, 1, 1], [], []>} : vector<8x36xf32>, vector<36x256xf32>, vector<8x256xf32> -> vector<8x256xf32>
    %17 = vector.broadcast %3 : vector<8x1xf32> to vector<8x256xf32>
    %18 = arith.addf %16, %17 : vector<8x256xf32>
    %cst_7 = arith.constant 0.000000e+00 : f32
    %19 = vector.broadcast %cst_7 : f32 to vector<8x256xf32>
    %20 = arith.maximumf %18, %19 : vector<8x256xf32>
    %c0_8 = arith.constant 0 : index
    %c0_9 = arith.constant 0 : index
    %21 = vector.load %arg4[%c0_8, %c0_9] : memref<8x72xf32, #tpu.memory_space<vmem>>, vector<8x72xf32>
    %c0_10 = arith.constant 0 : index
    %c0_11 = arith.constant 0 : index
    %22 = vector.load %arg5[%c0_10, %c0_11] : memref<8x1xf32, #tpu.memory_space<vmem>>, vector<8x1xf32>
    %cst_12 = arith.constant 0.000000e+00 : f32
    %23 = vector.broadcast %cst_12 : f32 to vector<8x128xf32>
    %24 = tpu.concatenate %20, %23 in 1 : vector<8x256xf32>, vector<8x128xf32> -> vector<8x384xf32>
    %25 = vector.extract_strided_slice %24 {offsets = [0, 0], sizes = [8, 256], strides = [1, 1]} : vector<8x384xf32> to vector<8x256xf32>
    %26 = vector.extract_strided_slice %24 {offsets = [0, 1], sizes = [8, 256], strides = [1, 1]} : vector<8x384xf32> to vector<8x256xf32>
    %27 = vector.extract_strided_slice %24 {offsets = [0, 2], sizes = [8, 256], strides = [1, 1]} : vector<8x384xf32> to vector<8x256xf32>
    %28 = vector.extract_strided_slice %24 {offsets = [0, 16], sizes = [8, 256], strides = [1, 1]} : vector<8x384xf32> to vector<8x256xf32>
    %29 = vector.extract_strided_slice %24 {offsets = [0, 17], sizes = [8, 256], strides = [1, 1]} : vector<8x384xf32> to vector<8x256xf32>
    %30 = vector.extract_strided_slice %24 {offsets = [0, 18], sizes = [8, 256], strides = [1, 1]} : vector<8x384xf32> to vector<8x256xf32>
    %31 = vector.extract_strided_slice %24 {offsets = [0, 32], sizes = [8, 256], strides = [1, 1]} : vector<8x384xf32> to vector<8x256xf32>
    %32 = vector.extract_strided_slice %24 {offsets = [0, 33], sizes = [8, 256], strides = [1, 1]} : vector<8x384xf32> to vector<8x256xf32>
    %33 = vector.extract_strided_slice %24 {offsets = [0, 34], sizes = [8, 256], strides = [1, 1]} : vector<8x384xf32> to vector<8x256xf32>
    %34 = tpu.concatenate %25, %26, %27, %28, %29, %30, %31, %32, %33 in 0 : vector<8x256xf32>, vector<8x256xf32>, vector<8x256xf32>, vector<8x256xf32>, vector<8x256xf32>, vector<8x256xf32>, vector<8x256xf32>, vector<8x256xf32>, vector<8x256xf32> -> vector<72x256xf32>
    %cst_13 = arith.constant dense<0.000000e+00> : vector<8x256xf32>
    %35 = tpu.matmul %21, %34, %cst_13 {dimension_numbers = #tpu.dot_dimension_numbers<[1], [0], [0], [1], [0, 0, 1, 1], [], []>} : vector<8x72xf32>, vector<72x256xf32>, vector<8x256xf32> -> vector<8x256xf32>
    %36 = vector.broadcast %22 : vector<8x1xf32> to vector<8x256xf32>
    %37 = arith.addf %35, %36 : vector<8x256xf32>
    %cst_14 = arith.constant 0.000000e+00 : f32
    %38 = vector.broadcast %cst_14 : f32 to vector<8x256xf32>
    %39 = arith.maximumf %37, %38 : vector<8x256xf32>
    %c0_15 = arith.constant 0 : index
    %c0_16 = arith.constant 0 : index
    %40 = vector.load %arg6[%c0_15, %c0_16] : memref<16x8xf32, #tpu.memory_space<vmem>>, vector<16x8xf32>
    %cst_17 = arith.constant dense<0.000000e+00> : vector<16x256xf32>
    %41 = tpu.matmul %40, %39, %cst_17 {dimension_numbers = #tpu.dot_dimension_numbers<[1], [0], [0], [1], [0, 0, 1, 1], [], []>} : vector<16x8xf32>, vector<8x256xf32>, vector<16x256xf32> -> vector<16x256xf32>
    %c0_18 = arith.constant 0 : index
    %c0_19 = arith.constant 0 : index
    %42 = vector.load %arg7[%c0_18, %c0_19] : memref<16x1xf32, #tpu.memory_space<vmem>>, vector<16x1xf32>
    %43 = vector.broadcast %42 : vector<16x1xf32> to vector<16x256xf32>
    %44 = arith.addf %41, %43 : vector<16x256xf32>
    %c0_20 = arith.constant 0 : index
    %c0_21 = arith.constant 0 : index
    %c0_22 = arith.constant 0 : index
    %45 = vector.load %arg8[%c0_20, %c0_21, %c0_22] : memref<1x16x256xf32, #tpu.memory_space<vmem>>, vector<1x16x256xf32>
    %46 = vector.shape_cast %45 : vector<1x16x256xf32> to vector<16x256xf32>
    %47 = vector.shape_cast %44 : vector<16x256xf32> to vector<1x16x256xf32>
    tpu.vector_store %arg8[%c0_20, %c0_21, %c0_22], %47 {strides = array<i32>} : memref<1x16x256xf32, #tpu.memory_space<vmem>>, vector<1x16x256xf32>,
    return
  }
  func.func @transform_0(%arg0: i32) -> (i32, i32, i32) {
    %c0_i32 = arith.constant 0 : i32
    %c0_i32_0 = arith.constant 0 : i32
    %c0_i32_1 = arith.constant 0 : i32
    return %arg0, %c0_i32, %c0_i32_0 : i32, i32, i32
  }
  func.func @transform_1(%arg0: i32) -> (i32, i32) {
    %c0_i32 = arith.constant 0 : i32
    %c0_i32_0 = arith.constant 0 : i32
    %c0_i32_1 = arith.constant 0 : i32
    return %c0_i32, %c0_i32_0 : i32, i32
  }
  func.func @transform_2(%arg0: i32) -> (i32, i32) {
    %c0_i32 = arith.constant 0 : i32
    %c0_i32_0 = arith.constant 0 : i32
    %c0_i32_1 = arith.constant 0 : i32
    return %c0_i32, %c0_i32_0 : i32, i32
  }
  func.func @transform_3(%arg0: i32) -> (i32, i32) {
    %c0_i32 = arith.constant 0 : i32
    %c0_i32_0 = arith.constant 0 : i32
    %c0_i32_1 = arith.constant 0 : i32
    return %c0_i32, %c0_i32_0 : i32, i32
  }
  func.func @transform_4(%arg0: i32) -> (i32, i32) {
    %c0_i32 = arith.constant 0 : i32
    %c0_i32_0 = arith.constant 0 : i32
    %c0_i32_1 = arith.constant 0 : i32
    return %c0_i32, %c0_i32_0 : i32, i32
  }
  func.func @transform_5(%arg0: i32) -> (i32, i32) {
    %c0_i32 = arith.constant 0 : i32
    %c0_i32_0 = arith.constant 0 : i32
    %c0_i32_1 = arith.constant 0 : i32
    return %c0_i32, %c0_i32_0 : i32, i32
  }
  func.func @transform_6(%arg0: i32) -> (i32, i32) {
    %c0_i32 = arith.constant 0 : i32
    %c0_i32_0 = arith.constant 0 : i32
    %c0_i32_1 = arith.constant 0 : i32
    return %c0_i32, %c0_i32_0 : i32, i32
  }
  func.func @transform_7(%arg0: i32) -> (i32, i32, i32) {
    %c0_i32 = arith.constant 0 : i32
    %c0_i32_0 = arith.constant 0 : i32
    %c0_i32_1 = arith.constant 0 : i32
    return %arg0, %c0_i32, %c0_i32_0 : i32, i32, i32
  }
}

</mosaic_0001>

<llo_original>
// kernel: tile.6
$region0: #{tile.6}
  #allocation0 [shape = 's32[1]{0}', space=sflag, size = 0x4, scoped, tag = 'scoped memory for tile.6']
  %s0 = inlined_call_operand.vmem [shape: f32[4], index: 0, kind: input, shape index: {}]
  %s1 = inlined_call_operand.vmem [shape: f32[4,1,1,4], index: 1, kind: output, shape index: {}]
  // Predicated region
  $region2: #{tile.6} parent=0 // pred_check
    _
  $region3: #{tile.6} parent=0 // pred_check_branch
    %3 = sbr.rel (0) target = $region5
  $region4: #{tile.6} parent=0 // pred_region
    _
  $region5: #{tile.6} parent=0 // pred_fallthru
    _
  %v4 = vld [vmem:[%s0] ss:$0 sm:$0xff]
  %5 = vst [vmem:[%s1] sm:$0xf] %v4

// kernel: tile.0
$region0: #{tile.0}
  %s0 = inlined_call_operand.vmem [shape: f32[4,1,1,4], index: 0, kind: input, shape index: {}]
  %s1 = inlined_call_operand.vmem [shape: f32[16,1], index: 1, kind: output, shape index: {}]
  $region1: #{tile.0} parent=0
    #allocation0 [shape = 'u8[4096]{0}', space=vmem, size = 0x1000, scoped, tag = 'scoped mem for input reshape']
    %s3 = sshllo.u32 0, 4
    %v4 = vld [vmem:[%s0] sm:%s3]
    %5 = vst [vmem:[#allocation0] sm:%s3] %v4
    %v6 = vld [vmem:[#allocation0] sm:$0xf]
    %vm7 = vcmask 7168
    %8 = vst.msk [vmem:[%s1] ss:$4 sm:$0xf] %vm7, %v6
    %v9 = vld [vmem:[#allocation0] sm:$0xf]
    %10 = vrot.lane.b32.xlu0 %v9, 127
    %v11 = vpop.permute.xlu0 %10
    %vm12 = vcmask 7168
    %s13 = scalar_lea.vmem %s1, 1
    %14 = vst.msk [vmem:[%s13] ss:$4 sm:$0xf] %vm12, %v11
    %v15 = vld [vmem:[#allocation0] sm:$0xf]
    %16 = vrot.lane.b32.xlu0 %v15, 126
    %v17 = vpop.permute.xlu0 %16
    %vm18 = vcmask 7168
    %s19 = scalar_lea.vmem %s1, 2
    %20 = vst.msk [vmem:[%s19] ss:$4 sm:$0xf] %vm18, %v17
    %v21 = vld [vmem:[#allocation0] sm:$0xf]
    %22 = vrot.lane.b32.xlu0 %v21, 125
    %v23 = vpop.permute.xlu0 %22
    %vm24 = vcmask 7168
    %s25 = scalar_lea.vmem %s1, 3
    %26 = vst.msk [vmem:[%s25] ss:$4 sm:$0xf] %vm24, %v23

// kernel: _lambda_.1
$region0: #{_lambda_.1}
  #allocation0 [shape = 'u32[]', space=smem, size = 0x4, offset = 0x4, fixed_abs, tag = 'smem constant byte address 0x4 - core index']
  #allocation1 [shape = 'u32[144,128]{1,0:T(1,128)}', space=vmem, size = 0x12000, scoped, tag = 'internal scratch']
  %s0 = inlined_call_operand.vmem [shape: f32[2,4,256], index: 0, kind: input, shape index: {}]
  %s1 = inlined_call_operand.vmem [shape: f32[8,36], index: 1, kind: input, shape index: {}]
  %s2 = inlined_call_operand.vmem [shape: f32[8,1], index: 2, kind: input, shape index: {}]
  %s3 = inlined_call_operand.vmem [shape: f32[8,72], index: 3, kind: input, shape index: {}]
  %s4 = inlined_call_operand.vmem [shape: f32[8,1], index: 4, kind: input, shape index: {}]
  %s5 = inlined_call_operand.vmem [shape: f32[16,8], index: 5, kind: input, shape index: {}]
  %s6 = inlined_call_operand.vmem [shape: f32[16,1], index: 6, kind: input, shape index: {}]
  %s7 = inlined_call_operand.vmem [shape: f32[2,16,256], index: 7, kind: output, shape index: {}]
  %s8 = sld [smem:[#allocation0]]
  $region61: #{_lambda_.1} parent=0
    _
  %s10 = ssub.s32 1, %s8
  %s11 = scalar_select 0, %s10, %s8
  loop: start=0, step=1, limit=4
  $region2: #{_lambda_.1} parent=0 // loop_pre_header
    _
  $region3: #{_lambda_.1} parent=0 // loop_header
    %s13 = sphi 0, %s17
    %p14 = scmp.ge.s32.totalorder %s13, 4
    %s23 = sphi 0, %s25
    %s26 = sphi 0, %s23
    %s27 = sphi 0, %s26
    %s43 = sphi 0, %s27
    %s47 = sphi 0, %s47
    %s49 = sphi 0, %s47
    %s50 = sphi 0, %s49
    %s64 = sphi 0, %s50
    %s68 = sphi 0, %s68
    %s70 = sphi 0, %s68
    %s71 = sphi 0, %s70
    %s85 = sphi 0, %s71
    %s89 = sphi 0, %s89
    %s91 = sphi 0, %s89
    %s92 = sphi 0, %s91
    %s106 = sphi 0, %s92
    %s110 = sphi 0, %s110
    %s112 = sphi 0, %s110
    %s113 = sphi 0, %s112
    %s127 = sphi 0, %s113
    %s131 = sphi 0, %s131
    %s133 = sphi 0, %s131
    %s134 = sphi 0, %s133
    %s148 = sphi 0, %s134
    %s152 = sphi 0, %s152
    %s154 = sphi 0, %s152
    %s155 = sphi 0, %s154
    %s169 = sphi 0, %s155
    %s175 = sphi 0, %s177
    %s178 = sphi 0, %s175
    %s179 = sphi 0, %s178
    %s195 = sphi 0, %s179
  $region4: #{_lambda_.1} parent=0 // loop_header_branch
    %16 = sbr.rel (%p14) target = $region8
  $region5: #{_lambda_.1} parent=0 // loop_body
    %s18 = ssub.s32 %s13, 1
    %s19 = ssub.s32 %s13, 2
    %s20 = sadd.s32 %s13, 1
    %s21 = ssub.s32 %s13, %s20
    %p22 = scmp.eq.s32.totalorder %s21, 0
    %s24 = sadd.s32 %s23, 1
    %s25 = scalar_select %p22, %s23, %s24
    %p28 = pneg %p22
    %p29 = scmp.eq.s32.totalorder %s13, 1
    %p30 = por %p28, %p29
    %p31 = scmp.ne.s32.totalorder %s23, %s26
    %p32 = scmp.eq.s32.totalorder %s13, 0
    %p33 = por %p31, %p32
    %p34 = scmp.ne.s32.totalorder %s23, %s26
    %p35 = scmp.eq.s32.totalorder %s18, 1
    %p36 = por %p34, %p35
    %p37 = scmp.ne.s32.totalorder %s26, %s27
    %p38 = scmp.eq.s32.totalorder %s18, 0
    %p39 = por %p37, %p38
    %p40 = scmp.ne.s32.totalorder %s26, %s27
    %p41 = scmp.eq.s32.totalorder %s19, 1
    %p42 = por %p40, %p41
    %p44 = scmp.ne.s32.totalorder %s27, %s43
    %p45 = scmp.eq.s32.totalorder %s19, 0
    %p46 = por %p44, %p45
    %s48 = sadd.s32 %s47, 1
    %p51 = scmp.eq.s32.totalorder %s13, 1
    %p52 = scmp.ne.s32.totalorder %s47, %s49
    %p53 = scmp.eq.s32.totalorder %s13, 0
    %p54 = por %p52, %p53
    %p55 = scmp.ne.s32.totalorder %s47, %s49
    %p56 = scmp.eq.s32.totalorder %s18, 1
    %p57 = por %p55, %p56
    %p58 = scmp.ne.s32.totalorder %s49, %s50
    %p59 = scmp.eq.s32.totalorder %s18, 0
    %p60 = por %p58, %p59
    %p61 = scmp.ne.s32.totalorder %s49, %s50
    %p62 = scmp.eq.s32.totalorder %s19, 1
    %p63 = por %p61, %p62
    %p65 = scmp.ne.s32.totalorder %s50, %s64
    %p66 = scmp.eq.s32.totalorder %s19, 0
    %p67 = por %p65, %p66
    %s69 = sadd.s32 %s68, 1
    %p72 = scmp.eq.s32.totalorder %s13, 1
    %p73 = scmp.ne.s32.totalorder %s68, %s70
    %p74 = scmp.eq.s32.totalorder %s13, 0
    %p75 = por %p73, %p74
    %p76 = scmp.ne.s32.totalorder %s68, %s70
    %p77 = scmp.eq.s32.totalorder %s18, 1
    %p78 = por %p76, %p77
    %p79 = scmp.ne.s32.totalorder %s70, %s71
    %p80 = scmp.eq.s32.totalorder %s18, 0
    %p81 = por %p79, %p80
    %p82 = scmp.ne.s32.totalorder %s70, %s71
    %p83 = scmp.eq.s32.totalorder %s19, 1
    %p84 = por %p82, %p83
    %p86 = scmp.ne.s32.totalorder %s71, %s85
    %p87 = scmp.eq.s32.totalorder %s19, 0
    %p88 = por %p86, %p87
    %s90 = sadd.s32 %s89, 1
    %p93 = scmp.eq.s32.totalorder %s13, 1
    %p94 = scmp.ne.s32.totalorder %s89, %s91
    %p95 = scmp.eq.s32.totalorder %s13, 0
    %p96 = por %p94, %p95
    %p97 = scmp.ne.s32.totalorder %s89, %s91
    %p98 = scmp.eq.s32.totalorder %s18, 1
    %p99 = por %p97, %p98
    %p100 = scmp.ne.s32.totalorder %s91, %s92
    %p101 = scmp.eq.s32.totalorder %s18, 0
    %p102 = por %p100, %p101
    %p103 = scmp.ne.s32.totalorder %s91, %s92
    %p104 = scmp.eq.s32.totalorder %s19, 1
    %p105 = por %p103, %p104
    %p107 = scmp.ne.s32.totalorder %s92, %s106
    %p108 = scmp.eq.s32.totalorder %s19, 0
    %p109 = por %p107, %p108
    %s111 = sadd.s32 %s110, 1
    %p114 = scmp.eq.s32.totalorder %s13, 1
    %p115 = scmp.ne.s32.totalorder %s110, %s112
    %p116 = scmp.eq.s32.totalorder %s13, 0
    %p117 = por %p115, %p116
    %p118 = scmp.ne.s32.totalorder %s110, %s112
    %p119 = scmp.eq.s32.totalorder %s18, 1
    %p120 = por %p118, %p119
    %p121 = scmp.ne.s32.totalorder %s112, %s113
    %p122 = scmp.eq.s32.totalorder %s18, 0
    %p123 = por %p121, %p122
    %p124 = scmp.ne.s32.totalorder %s112, %s113
    %p125 = scmp.eq.s32.totalorder %s19, 1
    %p126 = por %p124, %p125
    %p128 = scmp.ne.s32.totalorder %s113, %s127
    %p129 = scmp.eq.s32.totalorder %s19, 0
    %p130 = por %p128, %p129
    %s132 = sadd.s32 %s131, 1
    %p135 = scmp.eq.s32.totalorder %s13, 1
    %p136 = scmp.ne.s32.totalorder %s131, %s133
    %p137 = scmp.eq.s32.totalorder %s13, 0
    %p138 = por %p136, %p137
    %p139 = scmp.ne.s32.totalorder %s131, %s133
    %p140 = scmp.eq.s32.totalorder %s18, 1
    %p141 = por %p139, %p140
    %p142 = scmp.ne.s32.totalorder %s133, %s134
    %p143 = scmp.eq.s32.totalorder %s18, 0
    %p144 = por %p142, %p143
    %p145 = scmp.ne.s32.totalorder %s133, %s134
    %p146 = scmp.eq.s32.totalorder %s19, 1
    %p147 = por %p145, %p146
    %p149 = scmp.ne.s32.totalorder %s134, %s148
    %p150 = scmp.eq.s32.totalorder %s19, 0
    %p151 = por %p149, %p150
    %s153 = sadd.s32 %s152, 1
    %p156 = scmp.eq.s32.totalorder %s13, 1
    %p157 = scmp.ne.s32.totalorder %s152, %s154
    %p158 = scmp.eq.s32.totalorder %s13, 0
    %p159 = por %p157, %p158
    %p160 = scmp.ne.s32.totalorder %s152, %s154
    %p161 = scmp.eq.s32.totalorder %s18, 1
    %p162 = por %p160, %p161
    %p163 = scmp.ne.s32.totalorder %s154, %s155
    %p164 = scmp.eq.s32.totalorder %s18, 0
    %p165 = por %p163, %p164
    %p166 = scmp.ne.s32.totalorder %s154, %s155
    %p167 = scmp.eq.s32.totalorder %s19, 1
    %p168 = por %p166, %p167
    %p170 = scmp.ne.s32.totalorder %s155, %s169
    %p171 = scmp.eq.s32.totalorder %s19, 0
    %p172 = por %p170, %p171
    %s173 = ssub.s32 %s13, %s20
    %p174 = scmp.eq.s32.totalorder %s173, 0
    %s176 = sadd.s32 %s175, 1
    %s177 = scalar_select %p174, %s175, %s176
    %p180 = pneg %p174
    %p181 = scmp.eq.s32.totalorder %s13, 1
    %p182 = por %p180, %p181
    %p183 = scmp.ne.s32.totalorder %s175, %s178
    %p184 = scmp.eq.s32.totalorder %s13, 0
    %p185 = por %p183, %p184
    %p186 = scmp.ne.s32.totalorder %s175, %s178
    %p187 = scmp.eq.s32.totalorder %s18, 1
    %p188 = por %p186, %p187
    %p189 = scmp.ne.s32.totalorder %s178, %s179
    %p190 = scmp.eq.s32.totalorder %s18, 0
    %p191 = por %p189, %p190
    %p192 = scmp.ne.s32.totalorder %s178, %s179
    %p193 = scmp.eq.s32.totalorder %s19, 1
    %p194 = por %p192, %p193
    %p196 = scmp.ne.s32.totalorder %s179, %s195
    %p197 = scmp.eq.s32.totalorder %s19, 0
    %p198 = por %p196, %p197
    %p199 = scmp.le.s32.totalorder 1, %s13
    %p200 = scmp.lt.s32.totalorder %s13, 3
    %p201 = pnand %p199, %p200
    %p202 = pneg %p201
    // Predicated region
    $region9: #{_lambda_.1} parent=5 // pred_check
      _
    $region10: #{_lambda_.1} parent=5 // pred_check_branch
      %204 = sbr.rel (%p201) target = $region12
    $region11: #{_lambda_.1} parent=5 // pred_region
      %s205 = ssub.s32 %s13, 1
      // Predicated region
      $region13: #{_lambda_.1} parent=11 // pred_check
        %p206 = pneg %p60
      $region14: #{_lambda_.1} parent=11 // pred_check_branch
        %208 = sbr.rel (%p206) target = $region16
      $region15: #{_lambda_.1} parent=11 // pred_region
        _
      $region16: #{_lambda_.1} parent=11 // pred_fallthru
        _
      // Predicated region
      $region17: #{_lambda_.1} parent=11 // pred_check
        %p209 = pneg %p81
      $region18: #{_lambda_.1} parent=11 // pred_check_branch
        %211 = sbr.rel (%p209) target = $region20
      $region19: #{_lambda_.1} parent=11 // pred_region
        _
      $region20: #{_lambda_.1} parent=11 // pred_fallthru
        _
      // Predicated region
      $region21: #{_lambda_.1} parent=11 // pred_check
        %p212 = pneg %p102
      $region22: #{_lambda_.1} parent=11 // pred_check_branch
        %214 = sbr.rel (%p212) target = $region24
      $region23: #{_lambda_.1} parent=11 // pred_region
        _
      $region24: #{_lambda_.1} parent=11 // pred_fallthru
        _
      // Predicated region
      $region25: #{_lambda_.1} parent=11 // pred_check
        %p215 = pneg %p123
      $region26: #{_lambda_.1} parent=11 // pred_check_branch
        %217 = sbr.rel (%p215) target = $region28
      $region27: #{_lambda_.1} parent=11 // pred_region
        _
      $region28: #{_lambda_.1} parent=11 // pred_fallthru
        _
      // Predicated region
      $region29: #{_lambda_.1} parent=11 // pred_check
        %p218 = pneg %p144
      $region30: #{_lambda_.1} parent=11 // pred_check_branch
        %220 = sbr.rel (%p218) target = $region32
      $region31: #{_lambda_.1} parent=11 // pred_region
        _
      $region32: #{_lambda_.1} parent=11 // pred_fallthru
        _
      // Predicated region
      $region33: #{_lambda_.1} parent=11 // pred_check
        %p221 = pneg %p165
      $region34: #{_lambda_.1} parent=11 // pred_check_branch
        %223 = sbr.rel (%p221) target = $region36
      $region35: #{_lambda_.1} parent=11 // pred_region
        _
      $region36: #{_lambda_.1} parent=11 // pred_fallthru
        _
    $region12: #{_lambda_.1} parent=5 // pred_fallthru
      _
    %p224 = scmp.lt.s32.totalorder %s13, 2
    // Predicated region
    $region37: #{_lambda_.1} parent=5 // pred_check
      %p225 = pneg %p224
    $region38: #{_lambda_.1} parent=5 // pred_check_branch
      %227 = sbr.rel (%p225) target = $region40
    $region39: #{_lambda_.1} parent=5 // pred_region
      // Predicated region
      $region41: #{_lambda_.1} parent=39 // pred_check
        %p228 = pneg %p33
      $region42: #{_lambda_.1} parent=39 // pred_check_branch
        %230 = sbr.rel (%p228) target = $region44
      $region43: #{_lambda_.1} parent=39 // pred_region
        %p231 = scmp.lt.s32.totalorder %s13, 1
        %s232 = scalar_select %p231, %s13, 1
        %s233 = smul.addr %s232, 2
        %s234 = smul.addr %s233, 4
        %s235 = scalar_lea.vmem %s0, %s234
      $region44: #{_lambda_.1} parent=39 // pred_fallthru
        _
    $region40: #{_lambda_.1} parent=5 // pred_fallthru
      _
    %p236 = scmp.le.s32.totalorder 1, %s13
    %p237 = scmp.lt.s32.totalorder %s13, 3
    %p238 = pnand %p236, %p237
    %p239 = pneg %p238
    // Predicated region
    $region45: #{_lambda_.1} parent=5 // pred_check
      _
    $region46: #{_lambda_.1} parent=5 // pred_check_branch
      %241 = sbr.rel (%p238) target = $region48
    $region47: #{_lambda_.1} parent=5 // pred_region
      %s242 = ssub.s32 %s13, 1
      %p243 = scmp.lt.s32.totalorder %s18, 1
      %s244 = scalar_select %p243, %s18, 1
      %s245 = smul.addr %s244, 2
      %s246 = smul.addr %s245, 4
      %s247 = scalar_lea.vmem %s0, %s246
      %p248 = pneg %p39
      %p249 = pneg %p36
      %p250 = pneg %p60
      %p251 = pneg %p57
      %p252 = pneg %p81
      %p253 = pneg %p78
      %p254 = pneg %p102
      %p255 = pneg %p99
      %p256 = pneg %p123
      %p257 = pneg %p120
      %p258 = pneg %p144
      %p259 = pneg %p141
      %p260 = pneg %p165
      %p261 = pneg %p162
      %p262 = pneg %p191
      %p263 = pneg %p188
      %p264 = scmp.lt.s32.totalorder %s18, 1
      %s265 = scalar_select %p264, %s18, 1
      %s266 = smul.addr %s265, 4
      %s267 = smul.addr %s266, 8
      %s268 = scalar_lea.vmem %s7, %s267
      %p269 = scmp.lt.s32.totalorder %s18, 1
      %s270 = scalar_select %p269, %s18, 1
      %s271 = smul.addr %s270, 2
      %s272 = smul.addr %s271, 4
      %s273 = scalar_lea.vmem %s0, %s272
      %p274 = scmp.lt.s32.totalorder %s18, 1
      %s275 = scalar_select %p274, %s18, 1
      %s276 = smul.addr %s275, 4
      %s277 = smul.addr %s276, 8
      %s278 = scalar_lea.vmem %s7, %s277
      %v279 = vld [vmem:[%s273] sm:$0xff]
      %v280 = vld [vmem:[%s1] sm:$0xff]
      %v281 = vld [vmem:[%s2] sm:$0xff]
      %v283 = vcombine.high %v279, %v279
      %v286 = vrot.slane %v279, 4
      %v287 = vrot.slane %v283, 4
      %v288 = vrot.slane 0.0, 4
      %289 = vrot.lane.b32.xlu0 %v286, 127
      %v290 = vpop.permute.xlu0 %289
      %291 = vrot.lane.b32.xlu0 %v287, 127
      %v292 = vpop.permute.xlu0 %291
      %293 = vrot.lane.b32.xlu0 %v288, 127
      %v294 = vpop.permute.xlu0 %293
      %vm295 = vcmask 1039360
      %v296 = vsel %vm295, %v290, %v292
      %v297 = vsel %vm295, %v292, %v294
      %300 = vrot.lane.b32.xlu0 %v279, 126
      %v301 = vpop.permute.xlu0 %300
      %302 = vrot.lane.b32.xlu0 %v283, 126
      %v303 = vpop.permute.xlu0 %302
      %304 = vrot.lane.b32.xlu0 0.0, 126
      %v305 = vpop.permute.xlu0 %304
      %vm306 = vcmask 1031168
      %v307 = vsel %vm306, %v301, %v303
      %v308 = vsel %vm306, %v303, %v305
      %311 = vrot.lane.b32.xlu0 %v286, 112
      %v312 = vpop.permute.xlu0 %311
      %313 = vrot.lane.b32.xlu0 %v287, 112
      %v314 = vpop.permute.xlu0 %313
      %315 = vrot.lane.b32.xlu0 %v288, 112
      %v316 = vpop.permute.xlu0 %315
      %vm317 = vcmask 916480
      %v318 = vsel %vm317, %v312, %v314
      %v319 = vsel %vm317, %v314, %v316
      %322 = vrot.lane.b32.xlu0 %v279, 111
      %v323 = vpop.permute.xlu0 %322
      %324 = vrot.lane.b32.xlu0 %v283, 111
      %v325 = vpop.permute.xlu0 %324
      %326 = vrot.lane.b32.xlu0 0.0, 111
      %v327 = vpop.permute.xlu0 %326
      %vm328 = vcmask 908288
      %v329 = vsel %vm328, %v323, %v325
      %v330 = vsel %vm328, %v325, %v327
      %333 = vrot.lane.b32.xlu0 %v286, 110
      %v334 = vpop.permute.xlu0 %333
      %335 = vrot.lane.b32.xlu0 %v287, 110
      %v336 = vpop.permute.xlu0 %335
      %337 = vrot.lane.b32.xlu0 %v288, 110
      %v338 = vpop.permute.xlu0 %337
      %vm339 = vcmask 900096
      %v340 = vsel %vm339, %v334, %v336
      %v341 = vsel %vm339, %v336, %v338
      %344 = vrot.lane.b32.xlu0 %v279, 96
      %v345 = vpop.permute.xlu0 %344
      %346 = vrot.lane.b32.xlu0 %v283, 96
      %v347 = vpop.permute.xlu0 %346
      %348 = vrot.lane.b32.xlu0 0.0, 96
      %v349 = vpop.permute.xlu0 %348
      %vm350 = vcmask 785408
      %v351 = vsel %vm350, %v345, %v347
      %v352 = vsel %vm350, %v347, %v349
      %355 = vrot.lane.b32.xlu0 %v286, 95
      %v356 = vpop.permute.xlu0 %355
      %357 = vrot.lane.b32.xlu0 %v287, 95
      %v358 = vpop.permute.xlu0 %357
      %359 = vrot.lane.b32.xlu0 %v288, 95
      %v360 = vpop.permute.xlu0 %359
      %vm361 = vcmask 777216
      %v362 = vsel %vm361, %v356, %v358
      %v363 = vsel %vm361, %v358, %v360
      %366 = vrot.lane.b32.xlu0 %v279, 94
      %v367 = vpop.permute.xlu0 %366
      %368 = vrot.lane.b32.xlu0 %v283, 94
      %v369 = vpop.permute.xlu0 %368
      %370 = vrot.lane.b32.xlu0 0.0, 94
      %v371 = vpop.permute.xlu0 %370
      %vm372 = vcmask 769024
      %v373 = vsel %vm372, %v367, %v369
      %v374 = vsel %vm372, %v369, %v371
      %vm375 = vcmask 1043456
      %v376 = vsel %vm375, %v279, %v296
      %v377 = vsel %vm375, %v283, %v297
      %v378 = vsel %vm375, %v307, %v318
      %v379 = vsel %vm375, %v308, %v319
      %v380 = vsel %vm375, %v329, %v340
      %v381 = vsel %vm375, %v330, %v341
      %v382 = vsel %vm375, %v351, %v362
      %v383 = vsel %vm375, %v352, %v363
      %385 = vset.pattern.permute.xlu0 0
      %386 = vperm.xlu0 %385, %v281
      %v387 = vpop.permute.xlu0 %386
      %vm389 = vcmask 293888
      %v391 = vsel %vm389, %v280, 0
      %v393 = vsel %vm375, %v373, 0
      %v395 = vsel %vm375, %v374, 0
      %397 = vmatprep.subr.mxu0 %v377
      %398 = vmatpush1.msra.mxu0 %v376
      %399 = vmatprep.subr.mxu0 %v379
      %400 = vmatpush1.msra.mxu0 %v378
      %401 = vmatprep.subr.mxu0 %v381
      %402 = vmatpush1.msra.mxu0 %v380
      %403 = vmatprep.subr.mxu0 %v383
      %404 = vmatpush1.msra.mxu0 %v382
      %405 = vmatprep.subr.mxu0 %v395
      %406 = vmatpush1.msra.mxu0 %v393
      %407 = vmatprep.subr.mxu0 0.0
      %408 = vmatpush1.msra.mxu0 0.0
      %409 = vmatprep.subr.mxu0 0.0
      %410 = vmatpush1.msra.mxu0 0.0
      %411 = vmatprep.subr.mxu0 0.0
      %412 = vmatpush1.msra.mxu0 0.0
      %413 = vmatprep.subr.mxu0 0.0
      %414 = vmatpush1.msra.mxu0 0.0
      %415 = vmatprep.subr.mxu0 0.0
      %416 = vmatpush1.msra.mxu0 0.0
      %417 = vmatprep.subr.mxu0 0.0
      %418 = vmatpush1.msra.mxu0 0.0
      %419 = vmatprep.subr.mxu0 0.0
      %420 = vmatpush1.msra.mxu0 0.0
      %421 = vmatprep.subr.mxu0 0.0
      %422 = vmatpush1.msra.mxu0 0.0
      %423 = vmatprep.subr.mxu0 0.0
      %424 = vmatpush1.msra.mxu0 0.0
      %425 = vmatprep.subr.mxu0 0.0
      %426 = vmatpush1.msra.mxu0 0.0
      %427 = vmatprep.subr.mxu0 0.0
      %428 = vmatpush1.msra.mxu0 0.0
      %429 = vmatprep.subr.mxu0 0.0
      %430 = vmatpush1.msra.mxu0 0.0
      %431 = vmatprep.subr.mxu0 0.0
      %432 = vmatpush1.msra.mxu0 0.0
      %433 = vmatprep.subr.mxu0 0.0
      %434 = vmatpush1.msra.mxu0 0.0
      %435 = vmatprep.subr.mxu0 0.0
      %436 = vmatpush1.msra.mxu0 0.0
      %437 = vmatprep.subr.mxu0 0.0
      %438 = vmatpush1.msra.mxu0 0.0
      %439 = vmatprep.subr.mxu0 0.0
      %440 = vmatpush1.msra.mxu0 0.0
      %441 = vmatprep.subr.mxu0 0.0
      %442 = vmatpush1.msra.mxu0 0.0
      %443 = vmatprep.subr.mxu0 0.0
      %444 = vmatpush1.msra.mxu0 0.0
      %445 = vmatprep.subr.mxu0 0.0
      %446 = vmatpush1.msra.mxu0 0.0
      %447 = vmatprep.subr.mxu0 0.0
      %448 = vmatpush1.msra.mxu0 0.0
      %449 = vmatprep.subr.mxu0 0.0
      %450 = vmatpush1.msra.mxu0 0.0
      %451 = vmatprep.subr.mxu0 0.0
      %452 = vmatpush1.msra.mxu0 0.0
      %453 = vmatprep.subr.mxu0 0.0
      %454 = vmatpush1.msra.mxu0 0.0
      %455 = vmatprep.subr.mxu0 0.0
      %456 = vmatpush1.msra.mxu0 0.0
      %457 = vmatprep.subr.mxu0 0.0
      %458 = vmatpush1.msra.mxu0 0.0
      %459 = vmatprep.subr.mxu0 0.0
      %460 = vmatpush1.msra.mxu0 0.0
      %461 = vmatprep.mubr.f32.mxu0 0.0
      %462 = vmatmul.mubr.f32.gmra.mrb[0].mxu0 %v391
      %v463 = vpop.f32.mrb[0].mxu0
      %v464 = vadd.f32 %v387, %v463
      %v465 = vpop.f32.mrb[0].mxu0
      %v466 = vadd.f32 %v387, %v465
      %467 = vdwg.mxu0
      %v468 = vmax.f32 %v464, 0.0
      %v469 = vmax.f32 %v466, 0.0
      %v470 = vld [vmem:[%s3] sm:$0xff]
      %v471 = vld [vmem:[%s4] sm:$0xff]
      %474 = vrot.lane.b32.xlu0 %v468, 127
      %v475 = vpop.permute.xlu0 %474
      %476 = vrot.lane.b32.xlu0 %v469, 127
      %v477 = vpop.permute.xlu0 %476
      %478 = vrot.lane.b32.xlu0 0.0, 127
      %v479 = vpop.permute.xlu0 %478
      %v480 = vsel %vm295, %v475, %v477
      %v481 = vsel %vm295, %v477, %v479
      %484 = vrot.lane.b32.xlu0 %v468, 126
      %v485 = vpop.permute.xlu0 %484
      %486 = vrot.lane.b32.xlu0 %v469, 126
      %v487 = vpop.permute.xlu0 %486
      %v488 = vsel %vm306, %v485, %v487
      %v489 = vsel %vm306, %v487, %v305
      %492 = vrot.lane.b32.xlu0 %v468, 112
      %v493 = vpop.permute.xlu0 %492
      %494 = vrot.lane.b32.xlu0 %v469, 112
      %v495 = vpop.permute.xlu0 %494
      %496 = vrot.lane.b32.xlu0 0.0, 112
      %v497 = vpop.permute.xlu0 %496
      %v498 = vsel %vm317, %v493, %v495
      %v499 = vsel %vm317, %v495, %v497
      %502 = vrot.lane.b32.xlu0 %v468, 111
      %v503 = vpop.permute.xlu0 %502
      %504 = vrot.lane.b32.xlu0 %v469, 111
      %v505 = vpop.permute.xlu0 %504
      %v506 = vsel %vm328, %v503, %v505
      %v507 = vsel %vm328, %v505, %v327
      %510 = vrot.lane.b32.xlu0 %v468, 110
      %v511 = vpop.permute.xlu0 %510
      %512 = vrot.lane.b32.xlu0 %v469, 110
      %v513 = vpop.permute.xlu0 %512
      %514 = vrot.lane.b32.xlu0 0.0, 110
      %v515 = vpop.permute.xlu0 %514
      %v516 = vsel %vm339, %v511, %v513
      %v517 = vsel %vm339, %v513, %v515
      %520 = vrot.lane.b32.xlu0 %v468, 96
      %v521 = vpop.permute.xlu0 %520
      %522 = vrot.lane.b32.xlu0 %v469, 96
      %v523 = vpop.permute.xlu0 %522
      %v524 = vsel %vm350, %v521, %v523
      %v525 = vsel %vm350, %v523, %v349
      %528 = vrot.lane.b32.xlu0 %v468, 95
      %v529 = vpop.permute.xlu0 %528
      %530 = vrot.lane.b32.xlu0 %v469, 95
      %v531 = vpop.permute.xlu0 %530
      %532 = vrot.lane.b32.xlu0 0.0, 95
      %v533 = vpop.permute.xlu0 %532
      %v534 = vsel %vm361, %v529, %v531
      %v535 = vsel %vm361, %v531, %v533
      %538 = vrot.lane.b32.xlu0 %v468, 94
      %v539 = vpop.permute.xlu0 %538
      %540 = vrot.lane.b32.xlu0 %v469, 94
      %v541 = vpop.permute.xlu0 %540
      %v542 = vsel %vm372, %v539, %v541
      %v543 = vsel %vm372, %v541, %v371
      %547 = vset.pattern.permute.xlu0 0
      %548 = vperm.xlu0 %547, %v471
      %v549 = vpop.permute.xlu0 %548
      %vm551 = vcmask 588800
      %v553 = vsel %vm551, %v470, 0
      %555 = vmatprep.subr.mxu0 %v469
      %556 = vmatpush1.msra.mxu0 %v468
      %557 = vmatprep.subr.mxu0 %v481
      %558 = vmatpush1.msra.mxu0 %v480
      %559 = vmatprep.subr.mxu0 %v489
      %560 = vmatpush1.msra.mxu0 %v488
      %561 = vmatprep.subr.mxu0 %v499
      %562 = vmatpush1.msra.mxu0 %v498
      %563 = vmatprep.subr.mxu0 %v507
      %564 = vmatpush1.msra.mxu0 %v506
      %565 = vmatprep.subr.mxu0 %v517
      %566 = vmatpush1.msra.mxu0 %v516
      %567 = vmatprep.subr.mxu0 %v525
      %568 = vmatpush1.msra.mxu0 %v524
      %569 = vmatprep.subr.mxu0 %v535
      %570 = vmatpush1.msra.mxu0 %v534
      %571 = vmatprep.subr.mxu0 %v543
      %572 = vmatpush1.msra.mxu0 %v542
      %573 = vmatprep.subr.mxu0 0.0
      %574 = vmatpush1.msra.mxu0 0.0
      %575 = vmatprep.subr.mxu0 0.0
      %576 = vmatpush1.msra.mxu0 0.0
      %577 = vmatprep.subr.mxu0 0.0
      %578 = vmatpush1.msra.mxu0 0.0
      %579 = vmatprep.subr.mxu0 0.0
      %580 = vmatpush1.msra.mxu0 0.0
      %581 = vmatprep.subr.mxu0 0.0
      %582 = vmatpush1.msra.mxu0 0.0
      %583 = vmatprep.subr.mxu0 0.0
      %584 = vmatpush1.msra.mxu0 0.0
      %585 = vmatprep.subr.mxu0 0.0
      %586 = vmatpush1.msra.mxu0 0.0
      %587 = vmatprep.subr.mxu0 0.0
      %588 = vmatpush1.msra.mxu0 0.0
      %589 = vmatprep.subr.mxu0 0.0
      %590 = vmatpush1.msra.mxu0 0.0
      %591 = vmatprep.subr.mxu0 0.0
      %592 = vmatpush1.msra.mxu0 0.0
      %593 = vmatprep.subr.mxu0 0.0
      %594 = vmatpush1.msra.mxu0 0.0
      %595 = vmatprep.subr.mxu0 0.0
      %596 = vmatpush1.msra.mxu0 0.0
      %597 = vmatprep.subr.mxu0 0.0
      %598 = vmatpush1.msra.mxu0 0.0
      %599 = vmatprep.subr.mxu0 0.0
      %600 = vmatpush1.msra.mxu0 0.0
      %601 = vmatprep.subr.mxu0 0.0
      %602 = vmatpush1.msra.mxu0 0.0
      %603 = vmatprep.subr.mxu0 0.0
      %604 = vmatpush1.msra.mxu0 0.0
      %605 = vmatprep.subr.mxu0 0.0
      %606 = vmatpush1.msra.mxu0 0.0
      %607 = vmatprep.subr.mxu0 0.0
      %608 = vmatpush1.msra.mxu0 0.0
      %609 = vmatprep.subr.mxu0 0.0
      %610 = vmatpush1.msra.mxu0 0.0
      %611 = vmatprep.subr.mxu0 0.0
      %612 = vmatpush1.msra.mxu0 0.0
      %613 = vmatprep.subr.mxu0 0.0
      %614 = vmatpush1.msra.mxu0 0.0
      %615 = vmatprep.subr.mxu0 0.0
      %616 = vmatpush1.msra.mxu0 0.0
      %617 = vmatprep.subr.mxu0 0.0
      %618 = vmatpush1.msra.mxu0 0.0
      %619 = vmatprep.mubr.f32.mxu0 0.0
      %620 = vmatmul.mubr.f32.gmra.mrb[0].mxu0 %v553
      %v621 = vpop.f32.mrb[0].mxu0
      %v622 = vadd.f32 %v549, %v621
      %v623 = vpop.f32.mrb[0].mxu0
      %v624 = vadd.f32 %v549, %v623
      %625 = vdwg.mxu0
      %v626 = vmax.f32 %v622, 0.0
      %v627 = vmax.f32 %v624, 0.0
      %v628 = vld [vmem:[%s5] sm:$0xff]
      %v629 = vld [vmem:[%s5 + $0x8] sm:$0xff]
      %v630 = vld [vmem:[%s6] sm:$0xff]
      %v631 = vld [vmem:[%s6 + $0x8] sm:$0xff]
      %633 = vset.pattern.permute.xlu0 0
      %634 = vperm.xlu0 %633, %v630
      %v635 = vpop.permute.xlu0 %634
      %638 = vset.pattern.permute.xlu0 0
      %639 = vperm.xlu0 %638, %v631
      %v640 = vpop.permute.xlu0 %639
      %vm642 = vcmask 64512
      %v644 = vsel %vm642, %v628, 0
      %v647 = vsel %vm642, %v629, 0
      %649 = vmatprep.subr.mxu0 %v627
      %650 = vmatpush1.msra.mxu0 %v626
      %651 = vmatprep.subr.mxu0 0.0
      %652 = vmatpush1.msra.mxu0 0.0
      %653 = vmatprep.subr.mxu0 0.0
      %654 = vmatpush1.msra.mxu0 0.0
      %655 = vmatprep.subr.mxu0 0.0
      %656 = vmatpush1.msra.mxu0 0.0
      %657 = vmatprep.subr.mxu0 0.0
      %658 = vmatpush1.msra.mxu0 0.0
      %659 = vmatprep.subr.mxu0 0.0
      %660 = vmatpush1.msra.mxu0 0.0
      %661 = vmatprep.subr.mxu0 0.0
      %662 = vmatpush1.msra.mxu0 0.0
      %663 = vmatprep.subr.mxu0 0.0
      %664 = vmatpush1.msra.mxu0 0.0
      %665 = vmatprep.subr.mxu0 0.0
      %666 = vmatpush1.msra.mxu0 0.0
      %667 = vmatprep.subr.mxu0 0.0
      %668 = vmatpush1.msra.mxu0 0.0
      %669 = vmatprep.subr.mxu0 0.0
      %670 = vmatpush1.msra.mxu0 0.0
      %671 = vmatprep.subr.mxu0 0.0
      %672 = vmatpush1.msra.mxu0 0.0
      %673 = vmatprep.subr.mxu0 0.0
      %674 = vmatpush1.msra.mxu0 0.0
      %675 = vmatprep.subr.mxu0 0.0
      %676 = vmatpush1.msra.mxu0 0.0
      %677 = vmatprep.subr.mxu0 0.0
      %678 = vmatpush1.msra.mxu0 0.0
      %679 = vmatprep.subr.mxu0 0.0
      %680 = vmatpush1.msra.mxu0 0.0
      %681 = vmatprep.subr.mxu0 0.0
      %682 = vmatpush1.msra.mxu0 0.0
      %683 = vmatprep.subr.mxu0 0.0
      %684 = vmatpush1.msra.mxu0 0.0
      %685 = vmatprep.subr.mxu0 0.0
      %686 = vmatpush1.msra.mxu0 0.0
      %687 = vmatprep.subr.mxu0 0.0
      %688 = vmatpush1.msra.mxu0 0.0
      %689 = vmatprep.subr.mxu0 0.0
      %690 = vmatpush1.msra.mxu0 0.0
      %691 = vmatprep.subr.mxu0 0.0
      %692 = vmatpush1.msra.mxu0 0.0
      %693 = vmatprep.subr.mxu0 0.0
      %694 = vmatpush1.msra.mxu0 0.0
      %695 = vmatprep.subr.mxu0 0.0
      %696 = vmatpush1.msra.mxu0 0.0
      %697 = vmatprep.subr.mxu0 0.0
      %698 = vmatpush1.msra.mxu0 0.0
      %699 = vmatprep.subr.mxu0 0.0
      %700 = vmatpush1.msra.mxu0 0.0
      %701 = vmatprep.subr.mxu0 0.0
      %702 = vmatpush1.msra.mxu0 0.0
      %703 = vmatprep.subr.mxu0 0.0
      %704 = vmatpush1.msra.mxu0 0.0
      %705 = vmatprep.subr.mxu0 0.0
      %706 = vmatpush1.msra.mxu0 0.0
      %707 = vmatprep.subr.mxu0 0.0
      %708 = vmatpush1.msra.mxu0 0.0
      %709 = vmatprep.subr.mxu0 0.0
      %710 = vmatpush1.msra.mxu0 0.0
      %711 = vmatprep.subr.mxu0 0.0
      %712 = vmatpush1.msra.mxu0 0.0
      %713 = vmatprep.mubr.f32.mxu0 0.0
      %714 = vmatmul.mubr.f32.gmra.mrb[0].mxu0 %v644
      %v715 = vpop.f32.mrb[0].mxu0
      %v716 = vadd.f32 %v635, %v715
      %v717 = vpop.f32.mrb[0].mxu0
      %v718 = vadd.f32 %v635, %v717
      %719 = vmatprep.mubr.f32.mxu0 0.0
      %720 = vmatmul.mubr.f32.gmra.mrb[0].mxu0 %v647
      %v721 = vpop.f32.mrb[0].mxu0
      %v722 = vadd.f32 %v640, %v721
      %v723 = vpop.f32.mrb[0].mxu0
      %v724 = vadd.f32 %v640, %v723
      %725 = vdwg.mxu0
      %726 = vst [vmem:[%s278] sm:$0xff] %v716
      %727 = vst [vmem:[%s278 + $0x8] sm:$0xff] %v718
      %728 = vst [vmem:[%s278 + $0x10] sm:$0xff] %v722
      %729 = vst [vmem:[%s278 + $0x18] sm:$0xff] %v724
      %p730 = scmp.lt.s32.totalorder %s18, 1
      %s731 = scalar_select %p730, %s18, 1
      %s732 = smul.addr %s731, 4
      %s733 = smul.addr %s732, 8
      %s734 = scalar_lea.vmem %s7, %s733
      // Predicated region
      $region49: #{_lambda_.1} parent=47 // pred_check
        %p735 = pneg %p188
      $region50: #{_lambda_.1} parent=47 // pred_check_branch
        %737 = sbr.rel (%p735) target = $region52
      $region51: #{_lambda_.1} parent=47 // pred_region
        _
      $region52: #{_lambda_.1} parent=47 // pred_fallthru
        _
    $region48: #{_lambda_.1} parent=5 // pred_fallthru
      _
    %p738 = scmp.le.s32.totalorder 2, %s13
    // Predicated region
    $region53: #{_lambda_.1} parent=5 // pred_check
      %p739 = pneg %p738
    $region54: #{_lambda_.1} parent=5 // pred_check_branch
      %741 = sbr.rel (%p739) target = $region56
    $region55: #{_lambda_.1} parent=5 // pred_region
      %s742 = ssub.s32 %s13, 2
      // Predicated region
      $region57: #{_lambda_.1} parent=55 // pred_check
        %p743 = pneg %p194
      $region58: #{_lambda_.1} parent=55 // pred_check_branch
        %745 = sbr.rel (%p743) target = $region60
      $region59: #{_lambda_.1} parent=55 // pred_region
        %p746 = scmp.lt.s32.totalorder %s19, 1
        %s747 = scalar_select %p746, %s19, 1
        %s748 = smul.addr %s747, 4
        %s749 = smul.addr %s748, 8
        %s750 = scalar_lea.vmem %s7, %s749
      $region60: #{_lambda_.1} parent=55 // pred_fallthru
        _
    $region56: #{_lambda_.1} parent=5 // pred_fallthru
      _
  $region6: #{_lambda_.1} parent=0 // loop_footer
    %s17 = sadd.s32 1, %s13
  $region7: #{_lambda_.1} parent=0 // loop_footer_branch
    %12 = sbr.rel target = $region3
  $region8: #{_lambda_.1} parent=0 // loop_exit
    _

</llo_original>
